<compile_context>
chip_gen: v6e
topology: v6e:2x2x1
jax: 0.10.0
libtpu: 0.0.40
codegen_flags: <defaults>
</compile_context>

<pallas_src>
import jax
import jax.numpy as jnp
from jax.experimental import pallas as pl
from jax.experimental.pallas import tpu as pltpu


def _star_relu_kernel(params_ref, x_ref, o_ref):
    # params_ref: SMEM f32[2] = [scale, bias]
    x = x_ref[...]
    r = jnp.maximum(x, jnp.zeros_like(x)).astype(jnp.float32)
    y = params_ref[0] * (r * r) + params_ref[1]
    o_ref[...] = y.astype(o_ref.dtype)


def _largest_divisor_leq(x: int, cap: int) -> int:
    """Largest divisor of x that is <= cap (cap >= 1). Trace-time only."""
    best = 1
    d = 1
    while d * d <= x:
        if x % d == 0:
            if d <= cap and d > best:
                best = d
            q = x // d
            if q <= cap and q > best:
                best = q
        d += 1
    return best


def star_relu(
    x: jax.Array,
    scale=1.0,
    bias=0.0,
    *,
    min_pallas_elements: int = 1 << 16,
    target_block_bytes: int = 2 * 1024 * 1024,
) -> jax.Array:
    """StarReLU: scale * relu(x)**2 + bias, elementwise, any float shape."""
    orig_shape = x.shape
    orig_dtype = x.dtype
    n = int(x.size)
    itemsize = jnp.dtype(orig_dtype).itemsize
    # Sublane packing multiple per dtype width (f32: 8, bf16: 16, 8-bit: 32).
    sub = {4: 8, 2: 16, 1: 32}.get(itemsize, 8)

    scale_s = jnp.asarray(scale, dtype=jnp.float32).reshape(())
    bias_s = jnp.asarray(bias, dtype=jnp.float32).reshape(())

    def _xla_path(xx):
        r = jnp.maximum(xx, 0).astype(jnp.float32)
        return (scale_s * (r * r) + bias_s).astype(orig_dtype)

    # Small tensors: launch + layout overhead dominates -> let XLA fuse it.
    if n < min_pallas_elements:
        return _xla_path(x)

    # Pick a lane width (multiple of 128) so the flattened size needs no
    # padding and the row count is a multiple of the sublane packing.
    lanes = None
    for cand in (2048, 1024, 512, 256, 128):
        if n % (cand * sub) == 0:
            lanes = cand
            break
    if lanes is None:
        # Awkward size: padding + trailing slice would add ~2 extra
        # full-tensor HBM passes, costing more than the kernel saves.
        return _xla_path(x)

    rows = n // lanes
    units = rows // sub

    # Block rows: multiple of `sub`, a divisor of `rows`, and sized so that
    # in + out, double-buffered (4x block bytes), fits the smallest scoped
    # VMEM default (16 MiB on v5e). Keep >= 2 grid steps when possible so
    # both v7x TensorCores issue DMAs.
    max_units = max(1, target_block_bytes // (lanes * itemsize * sub))
    cap_units = min(max_units, units)
    if units >= 2:
        cap_units = min(cap_units, max(1, units // 2))
    tile_rows = _largest_divisor_leq(units, max(1, cap_units)) * sub
    grid = (rows // tile_rows,)

    x2d = x.reshape(rows, lanes)          # contiguous reshape: free, no HBM pass
    params = jnp.stack([scale_s, bias_s])  # (2,) f32 -> SMEM

    out2d = pl.pallas_call(
        _star_relu_kernel,
        out_shape=jax.ShapeDtypeStruct((rows, lanes), orig_dtype),
        grid_spec=pltpu.PrefetchScalarGridSpec(
            num_scalar_prefetch=0,
            grid=grid,
            in_specs=[
                pl.BlockSpec(memory_space=pltpu.MemorySpace.SMEM),   # [scale, bias]
                pl.BlockSpec((tile_rows, lanes), lambda i: (i, 0)),
            ],
            out_specs=pl.BlockSpec((tile_rows, lanes), lambda i: (i, 0)),
        ),
        compiler_params=pltpu.CompilerParams(
            dimension_semantics=("parallel",),
        ),
        cost_estimate=pl.CostEstimate(
            flops=3 * n, transcendentals=0, bytes_accessed=2 * n * itemsize
        ),
    )(params, x2d)

    return out2d.reshape(orig_shape)


if __name__ == "__main__":
    key = jax.random.PRNGKey(0)
    k1, k2 = jax.random.split(key)

    # Learnable scalar params of StarReLU (metaformer uses s~0.8944, b~-0.4472).
    scale = jnp.full((1,), 0.8944, dtype=jnp.float32)
    bias = jnp.full((1,), -0.4472, dtype=jnp.float32)

    # Small NCHW input consistent with how metaformer uses this activation
    # (routed through the fused-XLA small-tensor path).
    x_small = jax.random.normal(k1, (2, 4, 16, 16), dtype=jnp.float32)
    y_small = star_relu(x_small, scale, bias)
    jax.block_until_ready(y_small)
    ref_small = scale * jnp.square(jnp.maximum(x_small, 0.0)) + bias
    assert y_small.shape == x_small.shape and y_small.dtype == x_small.dtype
    assert jnp.allclose(y_small, ref_small, atol=1e-6), "small mismatch vs reference"

    # Larger activation map that exercises the Pallas path (no padding needed:
    # 2*64*56*56 = 401408 = 392 rows x 1024 lanes, tile 56x1024, grid 7).
    x_big = jax.random.normal(k2, (2, 64, 56, 56), dtype=jnp.float32)
    y_big = star_relu(x_big, scale, bias)
    jax.block_until_ready(y_big)
    ref_big = scale * jnp.square(jnp.maximum(x_big, 0.0)) + bias
    assert y_big.shape == x_big.shape and y_big.dtype == x_big.dtype
    assert jnp.allclose(y_big, ref_big, atol=1e-6), "big mismatch vs reference"

    print("KERNEL_OK")
</pallas_src>

<mosaic_0001>
module attributes {stable_mosaic.version = 11 : i64} {
  func.func @_star_relu_kernel(%arg0: i32, %arg1: memref<2xf32, #tpu.memory_space<smem>>, %arg2: memref<56x1024xf32, #tpu.memory_space<vmem>>, %arg3: memref<56x1024xf32, #tpu.memory_space<vmem>>) attributes {dimension_semantics = [#tpu.dimension_semantics<parallel>], iteration_bounds = array<i64: 7>, scalar_prefetch = 0 : i64, scratch_operands = 0 : i64, tpu.core_type = #tpu.core_type<tc>, window_params = [{transform_indices = @transform_0, window_bounds = array<i64: 2>}, {transform_indices = @transform_1, window_bounds = array<i64: 56, 1024>}, {transform_indices = @transform_2, window_bounds = array<i64: 56, 1024>}]} {
    %c0 = arith.constant 0 : index
    %c0_0 = arith.constant 0 : index
    %0 = vector.load %arg2[%c0, %c0_0] : memref<56x1024xf32, #tpu.memory_space<vmem>>, vector<56x1024xf32>
    %cst = arith.constant 0.000000e+00 : f32
    %1 = vector.broadcast %cst : f32 to vector<56x1024xf32>
    %2 = arith.maximumf %0, %1 : vector<56x1024xf32>
    %c0_1 = arith.constant 0 : index
    %3 = memref.load %arg1[%c0_1] : memref<2xf32, #tpu.memory_space<smem>>
    %4 = arith.mulf %2, %2 : vector<56x1024xf32>
    %5 = vector.broadcast %3 : f32 to vector<56x1024xf32>
    %6 = arith.mulf %5, %4 : vector<56x1024xf32>
    %c1 = arith.constant 1 : index
    %7 = memref.load %arg1[%c1] : memref<2xf32, #tpu.memory_space<smem>>
    %8 = vector.broadcast %7 : f32 to vector<56x1024xf32>
    %9 = arith.addf %6, %8 : vector<56x1024xf32>
    %c0_2 = arith.constant 0 : index
    %c0_3 = arith.constant 0 : index
    %10 = vector.load %arg3[%c0_2, %c0_3] : memref<56x1024xf32, #tpu.memory_space<vmem>>, vector<56x1024xf32>
    tpu.vector_store %arg3[%c0_2, %c0_3], %9 {strides = array<i32>} : memref<56x1024xf32, #tpu.memory_space<vmem>>, vector<56x1024xf32>,
    return
  }
  func.func @transform_0(%arg0: i32) -> i32 {
    %c0_i32 = arith.constant 0 : i32
    %c0_i32_0 = arith.constant 0 : i32
    return %c0_i32 : i32
  }
  func.func @transform_1(%arg0: i32) -> (i32, i32) {
    %c0_i32 = arith.constant 0 : i32
    %c0_i32_0 = arith.constant 0 : i32
    return %arg0, %c0_i32 : i32, i32
  }
  func.func @transform_2(%arg0: i32) -> (i32, i32) {
    %c0_i32 = arith.constant 0 : i32
    %c0_i32_0 = arith.constant 0 : i32
    return %arg0, %c0_i32 : i32, i32
  }
}

</mosaic_0001>

<llo_original>
// kernel: tpu_custom_call.1
$region0: #{tpu_custom_call.1}
  #allocation0 [shape = 'u32[]', space=smem, size = 0x4, offset = 0x4, fixed_abs, tag = 'smem constant byte address 0x4 - core index']
  #allocation1 [shape = 'u32[144,128]{1,0:T(1,128)}', space=vmem, size = 0x12000, scoped, tag = 'internal scratch']
  %s0 = inlined_call_operand.hbm [shape: f32[2], index: 0, kind: input, shape index: {}]
  %s1 = inlined_call_operand.hbm [shape: f32[392,1024], index: 1, kind: input, shape index: {}]
  %s2 = inlined_call_operand.hbm [shape: f32[392,1024], index: 2, kind: output, shape index: {}]
  %s3 = sld [smem:[#allocation0]]
  $region49: #{tpu_custom_call.1} parent=0
    _
  %s5 = ssub.s32 1, %s3
  %s6 = scalar_select 0, %s5, %s3
  $region1: #{tpu_custom_call.1} parent=0
    #allocation2 [shape = 'u8[512]{0}', space=smem, size = 0x200, scoped, tag = 'input window, operand 0, single buffered']
    #allocation3 [shape = 's32[2]{0}', space=sflag, size = 0x8, scoped, tag = 'scoped memory for tpu_custom_call.1']
    #allocation4 [shape = 's32[2]{0}', space=sflag, size = 0x8, scoped, tag = 'scoped memory for tpu_custom_call.1']
    #allocation5 [shape = 's32[2]{0}', space=sflag, size = 0x8, scoped, tag = 'scoped memory for tpu_custom_call.1']
    #allocation6 [shape = 'u8[458752]{0}', space=vmem, size = 0x70000, scoped, tag = 'input window, operand 1']
    #allocation7 [shape = 'u8[458752]{0}', space=vmem, size = 0x70000, scoped, tag = 'output window, operand 0']
    %7 = vsyncpa [#allocation5], 0
    %8 = vsyncpa [#allocation3], 0
    %s9 = scalar_lea.sflag [#allocation3], 1
    %10 = vsyncpa %s9, 0
    %11 = vsyncpa [#allocation4], 0
    %s12 = scalar_lea.sflag [#allocation4], 1
    %13 = vsyncpa %s12, 0
    loop: start=0, step=1, limit=9
    $region2: #{tpu_custom_call.1} parent=1 // loop_pre_header
      _
    $region3: #{tpu_custom_call.1} parent=1 // loop_header
      %s15 = sphi 0, %s19
      %p16 = scmp.ge.s32.totalorder %s15, 9
      %s23 = sphi 0, %s23
      %s25 = sphi 0, %s23
      %s26 = sphi 0, %s25
      %s40 = sphi 0, %s26
      %s46 = sphi 0, %s48
      %s49 = sphi 0, %s46
      %s50 = sphi 0, %s49
      %s66 = sphi 0, %s50
      %s72 = sphi 0, %s74
      %s75 = sphi 0, %s72
      %s76 = sphi 0, %s75
      %s92 = sphi 0, %s76
    $region4: #{tpu_custom_call.1} parent=1 // loop_header_branch
      %18 = sbr.rel (%p16) target = $region8
    $region5: #{tpu_custom_call.1} parent=1 // loop_body
      %s20 = ssub.s32 %s15, 1
      %s21 = ssub.s32 %s15, 2
      %s22 = sadd.s32 %s15, 1
      %s24 = sadd.s32 %s23, 1
      %p27 = scmp.eq.s32.totalorder %s15, 6
      %p28 = scmp.ne.s32.totalorder %s23, %s25
      %p29 = scmp.eq.s32.totalorder %s15, 0
      %p30 = por %p28, %p29
      %p31 = scmp.ne.s32.totalorder %s23, %s25
      %p32 = scmp.eq.s32.totalorder %s20, 6
      %p33 = por %p31, %p32
      %p34 = scmp.ne.s32.totalorder %s25, %s26
      %p35 = scmp.eq.s32.totalorder %s20, 0
      %p36 = por %p34, %p35
      %p37 = scmp.ne.s32.totalorder %s25, %s26
      %p38 = scmp.eq.s32.totalorder %s21, 6
      %p39 = por %p37, %p38
      %p41 = scmp.ne.s32.totalorder %s26, %s40
      %p42 = scmp.eq.s32.totalorder %s21, 0
      %p43 = por %p41, %p42
      %s44 = ssub.s32 %s15, %s22
      %p45 = scmp.eq.s32.totalorder %s44, 0
      %s47 = sadd.s32 %s46, 1
      %s48 = scalar_select %p45, %s46, %s47
      %p51 = pneg %p45
      %p52 = scmp.eq.s32.totalorder %s15, 6
      %p53 = por %p51, %p52
      %p54 = scmp.ne.s32.totalorder %s46, %s49
      %p55 = scmp.eq.s32.totalorder %s15, 0
      %p56 = por %p54, %p55
      %p57 = scmp.ne.s32.totalorder %s46, %s49
      %p58 = scmp.eq.s32.totalorder %s20, 6
      %p59 = por %p57, %p58
      %p60 = scmp.ne.s32.totalorder %s49, %s50
      %p61 = scmp.eq.s32.totalorder %s20, 0
      %p62 = por %p60, %p61
      %p63 = scmp.ne.s32.totalorder %s49, %s50
      %p64 = scmp.eq.s32.totalorder %s21, 6
      %p65 = por %p63, %p64
      %p67 = scmp.ne.s32.totalorder %s50, %s66
      %p68 = scmp.eq.s32.totalorder %s21, 0
      %p69 = por %p67, %p68
      %s70 = ssub.s32 %s15, %s22
      %p71 = scmp.eq.s32.totalorder %s70, 0
      %s73 = sadd.s32 %s72, 1
      %s74 = scalar_select %p71, %s72, %s73
      %p77 = pneg %p71
      %p78 = scmp.eq.s32.totalorder %s15, 6
      %p79 = por %p77, %p78
      %p80 = scmp.ne.s32.totalorder %s72, %s75
      %p81 = scmp.eq.s32.totalorder %s15, 0
      %p82 = por %p80, %p81
      %p83 = scmp.ne.s32.totalorder %s72, %s75
      %p84 = scmp.eq.s32.totalorder %s20, 6
      %p85 = por %p83, %p84
      %p86 = scmp.ne.s32.totalorder %s75, %s76
      %p87 = scmp.eq.s32.totalorder %s20, 0
      %p88 = por %p86, %p87
      %p89 = scmp.ne.s32.totalorder %s75, %s76
      %p90 = scmp.eq.s32.totalorder %s21, 6
      %p91 = por %p89, %p90
      %p93 = scmp.ne.s32.totalorder %s76, %s92
      %p94 = scmp.eq.s32.totalorder %s21, 0
      %p95 = por %p93, %p94
      %p96 = scmp.le.s32.totalorder 1, %s15
      %p97 = scmp.lt.s32.totalorder %s15, 8
      %p98 = pnand %p96, %p97
      %p99 = pneg %p98
      // Predicated region
      $region9: #{tpu_custom_call.1} parent=5 // pred_check
        _
      $region10: #{tpu_custom_call.1} parent=5 // pred_check_branch
        %101 = sbr.rel (%p98) target = $region12
      $region11: #{tpu_custom_call.1} parent=5 // pred_region
        %s102 = ssub.s32 %s15, 1
        // Predicated region
        $region13: #{tpu_custom_call.1} parent=11 // pred_check
          %p103 = pneg %p36
        $region14: #{tpu_custom_call.1} parent=11 // pred_check_branch
          %105 = sbr.rel (%p103) target = $region16
        $region15: #{tpu_custom_call.1} parent=11 // pred_region
          %s107 = ssub.s32 16, 16
          %108 = vsyncadd [#allocation5], %s107
          %111 = dma.hbm_to_smem %s0, 16, [#allocation2], [#allocation5]
        $region16: #{tpu_custom_call.1} parent=11 // pred_fallthru
          _
      $region12: #{tpu_custom_call.1} parent=5 // pred_fallthru
        _
      %p112 = scmp.lt.s32.totalorder %s15, 7
      // Predicated region
      $region17: #{tpu_custom_call.1} parent=5 // pred_check
        %p113 = pneg %p112
      $region18: #{tpu_custom_call.1} parent=5 // pred_check_branch
        %115 = sbr.rel (%p113) target = $region20
      $region19: #{tpu_custom_call.1} parent=5 // pred_region
        // Predicated region
        $region21: #{tpu_custom_call.1} parent=19 // pred_check
          %p116 = pneg %p56
        $region22: #{tpu_custom_call.1} parent=19 // pred_check_branch
          %118 = sbr.rel (%p116) target = $region24
        $region23: #{tpu_custom_call.1} parent=19 // pred_region
          %s119 = sand.u32 %s46, 1
          %s120 = scalar_lea.sflag [#allocation3], %s119
          %s121 = sand.u32 %s46, 1
          %s122 = smul.addr %s121, 448
          %s123 = scalar_lea.vmem [#allocation6], %s122
          %s124 = smul.u32 7, %s15
          %s126 = ssub.s32 7168, 7168
          %127 = vsyncadd %s120, %s126
          %s128 = smul.addr %s124, 8
          %s129 = smul.addr %s128, 128
          %s130 = scalar_lea.hbm %s1, %s129
          %s131 = sshll.u32 %s123, 4
          %s132 = int_to_ptr.vmem [resolvable:$true] %s131
          %137 = dma.hbm_to_vmem [thread:$0]  %s130, 7168, %s132, %s120, 1024, 1024, 64
        $region24: #{tpu_custom_call.1} parent=19 // pred_fallthru
          _
      $region20: #{tpu_custom_call.1} parent=5 // pred_fallthru
        _
      %p138 = scmp.le.s32.totalorder 1, %s15
      %p139 = scmp.lt.s32.totalorder %s15, 8
      %p140 = pnand %p138, %p139
      %p141 = pneg %p140
      // Predicated region
      $region25: #{tpu_custom_call.1} parent=5 // pred_check
        _
      $region26: #{tpu_custom_call.1} parent=5 // pred_check_branch
        %143 = sbr.rel (%p140) target = $region28
      $region27: #{tpu_custom_call.1} parent=5 // pred_region
        %s144 = ssub.s32 %s15, 1
        // Predicated region
        $region29: #{tpu_custom_call.1} parent=27 // pred_check
          %p145 = pneg %p36
        $region30: #{tpu_custom_call.1} parent=27 // pred_check_branch
          %147 = sbr.rel (%p145) target = $region32
        $region31: #{tpu_custom_call.1} parent=27 // pred_region
          %148 = dma.done [#allocation5], 16
        $region32: #{tpu_custom_call.1} parent=27 // pred_fallthru
          _
        %s149 = sand.u32 %s49, 1
        %s150 = scalar_lea.sflag [#allocation3], %s149
        %s151 = sand.u32 %s49, 1
        %s152 = smul.addr %s151, 448
        %s153 = scalar_lea.vmem [#allocation6], %s152
        // Predicated region
        $region33: #{tpu_custom_call.1} parent=27 // pred_check
          %p154 = pneg %p62
        $region34: #{tpu_custom_call.1} parent=27 // pred_check_branch
          %156 = sbr.rel (%p154) target = $region36
        $region35: #{tpu_custom_call.1} parent=27 // pred_region
          %157 = dma.done %s150, 7168
        $region36: #{tpu_custom_call.1} parent=27 // pred_fallthru
          _
        %158 = sfence
        %p159 = pneg %p36
        %p160 = pneg %p33
        %s161 = sand.u32 %s49, 1
        %s162 = scalar_lea.sflag [#allocation3], %s161
        %s163 = sand.u32 %s49, 1
        %s164 = smul.addr %s163, 448
        %s165 = scalar_lea.vmem [#allocation6], %s164
        %p166 = pneg %p62
        %p167 = pneg %p59
        %p168 = pneg %p88
        %p169 = pneg %p85
        %s170 = sand.u32 %s75, 1
        %s171 = scalar_lea.sflag [#allocation4], %s170
        %s172 = sand.u32 %s75, 1
        %s173 = smul.addr %s172, 448
        %s174 = scalar_lea.vmem [#allocation7], %s173
        %s175 = smul.u32 7, %s20
        %s176 = smul.u32 7, %s20
        %v177 = vld [vmem:[%s153] sm:$0xff]
        %v178 = vld [vmem:[%s153 + $0x8] sm:$0xff]
        %v179 = vld [vmem:[%s153 + $0x10] sm:$0xff]
        %v180 = vld [vmem:[%s153 + $0x18] sm:$0xff]
        %v181 = vld [vmem:[%s153 + $0x20] sm:$0xff]
        %v182 = vld [vmem:[%s153 + $0x28] sm:$0xff]
        %v183 = vld [vmem:[%s153 + $0x30] sm:$0xff]
        %v184 = vld [vmem:[%s153 + $0x38] sm:$0xff]
        %v185 = vld [vmem:[%s153 + $0x40] sm:$0xff]
        %v186 = vld [vmem:[%s153 + $0x48] sm:$0xff]
        %v187 = vld [vmem:[%s153 + $0x50] sm:$0xff]
        %v188 = vld [vmem:[%s153 + $0x58] sm:$0xff]
        %v189 = vld [vmem:[%s153 + $0x60] sm:$0xff]
        %v190 = vld [vmem:[%s153 + $0x68] sm:$0xff]
        %v191 = vld [vmem:[%s153 + $0x70] sm:$0xff]
        %v192 = vld [vmem:[%s153 + $0x78] sm:$0xff]
        %v193 = vld [vmem:[%s153 + $0x80] sm:$0xff]
        %v194 = vld [vmem:[%s153 + $0x88] sm:$0xff]
        %v195 = vld [vmem:[%s153 + $0x90] sm:$0xff]
        %v196 = vld [vmem:[%s153 + $0x98] sm:$0xff]
        %v197 = vld [vmem:[%s153 + $0xa0] sm:$0xff]
        %v198 = vld [vmem:[%s153 + $0xa8] sm:$0xff]
        %v199 = vld [vmem:[%s153 + $0xb0] sm:$0xff]
        %v200 = vld [vmem:[%s153 + $0xb8] sm:$0xff]
        %v201 = vld [vmem:[%s153 + $0xc0] sm:$0xff]
        %v202 = vld [vmem:[%s153 + $0xc8] sm:$0xff]
        %v203 = vld [vmem:[%s153 + $0xd0] sm:$0xff]
        %v204 = vld [vmem:[%s153 + $0xd8] sm:$0xff]
        %v205 = vld [vmem:[%s153 + $0xe0] sm:$0xff]
        %v206 = vld [vmem:[%s153 + $0xe8] sm:$0xff]
        %v207 = vld [vmem:[%s153 + $0xf0] sm:$0xff]
        %v208 = vld [vmem:[%s153 + $0xf8] sm:$0xff]
        %v209 = vld [vmem:[%s153 + $0x100] sm:$0xff]
        %v210 = vld [vmem:[%s153 + $0x108] sm:$0xff]
        %v211 = vld [vmem:[%s153 + $0x110] sm:$0xff]
        %v212 = vld [vmem:[%s153 + $0x118] sm:$0xff]
        %v213 = vld [vmem:[%s153 + $0x120] sm:$0xff]
        %v214 = vld [vmem:[%s153 + $0x128] sm:$0xff]
        %v215 = vld [vmem:[%s153 + $0x130] sm:$0xff]
        %v216 = vld [vmem:[%s153 + $0x138] sm:$0xff]
        %v217 = vld [vmem:[%s153 + $0x140] sm:$0xff]
        %v218 = vld [vmem:[%s153 + $0x148] sm:$0xff]
        %v219 = vld [vmem:[%s153 + $0x150] sm:$0xff]
        %v220 = vld [vmem:[%s153 + $0x158] sm:$0xff]
        %v221 = vld [vmem:[%s153 + $0x160] sm:$0xff]
        %v222 = vld [vmem:[%s153 + $0x168] sm:$0xff]
        %v223 = vld [vmem:[%s153 + $0x170] sm:$0xff]
        %v224 = vld [vmem:[%s153 + $0x178] sm:$0xff]
        %v225 = vld [vmem:[%s153 + $0x180] sm:$0xff]
        %v226 = vld [vmem:[%s153 + $0x188] sm:$0xff]
        %v227 = vld [vmem:[%s153 + $0x190] sm:$0xff]
        %v228 = vld [vmem:[%s153 + $0x198] sm:$0xff]
        %v229 = vld [vmem:[%s153 + $0x1a0] sm:$0xff]
        %v230 = vld [vmem:[%s153 + $0x1a8] sm:$0xff]
        %v231 = vld [vmem:[%s153 + $0x1b0] sm:$0xff]
        %v232 = vld [vmem:[%s153 + $0x1b8] sm:$0xff]
        %v233 = vmax.f32 %v177, 0.0
        %v234 = vmax.f32 %v178, 0.0
        %v235 = vmax.f32 %v179, 0.0
        %v236 = vmax.f32 %v180, 0.0
        %v237 = vmax.f32 %v181, 0.0
        %v238 = vmax.f32 %v182, 0.0
        %v239 = vmax.f32 %v183, 0.0
        %v240 = vmax.f32 %v184, 0.0
        %v241 = vmax.f32 %v185, 0.0
        %v242 = vmax.f32 %v186, 0.0
        %v243 = vmax.f32 %v187, 0.0
        %v244 = vmax.f32 %v188, 0.0
        %v245 = vmax.f32 %v189, 0.0
        %v246 = vmax.f32 %v190, 0.0
        %v247 = vmax.f32 %v191, 0.0
        %v248 = vmax.f32 %v192, 0.0
        %v249 = vmax.f32 %v193, 0.0
        %v250 = vmax.f32 %v194, 0.0
        %v251 = vmax.f32 %v195, 0.0
        %v252 = vmax.f32 %v196, 0.0
        %v253 = vmax.f32 %v197, 0.0
        %v254 = vmax.f32 %v198, 0.0
        %v255 = vmax.f32 %v199, 0.0
        %v256 = vmax.f32 %v200, 0.0
        %v257 = vmax.f32 %v201, 0.0
        %v258 = vmax.f32 %v202, 0.0
        %v259 = vmax.f32 %v203, 0.0
        %v260 = vmax.f32 %v204, 0.0
        %v261 = vmax.f32 %v205, 0.0
        %v262 = vmax.f32 %v206, 0.0
        %v263 = vmax.f32 %v207, 0.0
        %v264 = vmax.f32 %v208, 0.0
        %v265 = vmax.f32 %v209, 0.0
        %v266 = vmax.f32 %v210, 0.0
        %v267 = vmax.f32 %v211, 0.0
        %v268 = vmax.f32 %v212, 0.0
        %v269 = vmax.f32 %v213, 0.0
        %v270 = vmax.f32 %v214, 0.0
        %v271 = vmax.f32 %v215, 0.0
        %v272 = vmax.f32 %v216, 0.0
        %v273 = vmax.f32 %v217, 0.0
        %v274 = vmax.f32 %v218, 0.0
        %v275 = vmax.f32 %v219, 0.0
        %v276 = vmax.f32 %v220, 0.0
        %v277 = vmax.f32 %v221, 0.0
        %v278 = vmax.f32 %v222, 0.0
        %v279 = vmax.f32 %v223, 0.0
        %v280 = vmax.f32 %v224, 0.0
        %v281 = vmax.f32 %v225, 0.0
        %v282 = vmax.f32 %v226, 0.0
        %v283 = vmax.f32 %v227, 0.0
        %v284 = vmax.f32 %v228, 0.0
        %v285 = vmax.f32 %v229, 0.0
        %v286 = vmax.f32 %v230, 0.0
        %v287 = vmax.f32 %v231, 0.0
        %v288 = vmax.f32 %v232, 0.0
        %s289 = sld [smem:[#allocation2]]
        %v290 = vmul.f32 %v233, %v233
        %v291 = vmul.f32 %v234, %v234
        %v292 = vmul.f32 %v235, %v235
        %v293 = vmul.f32 %v236, %v236
        %v294 = vmul.f32 %v237, %v237
        %v295 = vmul.f32 %v238, %v238
        %v296 = vmul.f32 %v239, %v239
        %v297 = vmul.f32 %v240, %v240
        %v298 = vmul.f32 %v241, %v241
        %v299 = vmul.f32 %v242, %v242
        %v300 = vmul.f32 %v243, %v243
        %v301 = vmul.f32 %v244, %v244
        %v302 = vmul.f32 %v245, %v245
        %v303 = vmul.f32 %v246, %v246
        %v304 = vmul.f32 %v247, %v247
        %v305 = vmul.f32 %v248, %v248
        %v306 = vmul.f32 %v249, %v249
        %v307 = vmul.f32 %v250, %v250
        %v308 = vmul.f32 %v251, %v251
        %v309 = vmul.f32 %v252, %v252
        %v310 = vmul.f32 %v253, %v253
        %v311 = vmul.f32 %v254, %v254
        %v312 = vmul.f32 %v255, %v255
        %v313 = vmul.f32 %v256, %v256
        %v314 = vmul.f32 %v257, %v257
        %v315 = vmul.f32 %v258, %v258
        %v316 = vmul.f32 %v259, %v259
        %v317 = vmul.f32 %v260, %v260
        %v318 = vmul.f32 %v261, %v261
        %v319 = vmul.f32 %v262, %v262
        %v320 = vmul.f32 %v263, %v263
        %v321 = vmul.f32 %v264, %v264
        %v322 = vmul.f32 %v265, %v265
        %v323 = vmul.f32 %v266, %v266
        %v324 = vmul.f32 %v267, %v267
        %v325 = vmul.f32 %v268, %v268
        %v326 = vmul.f32 %v269, %v269
        %v327 = vmul.f32 %v270, %v270
        %v328 = vmul.f32 %v271, %v271
        %v329 = vmul.f32 %v272, %v272
        %v330 = vmul.f32 %v273, %v273
        %v331 = vmul.f32 %v274, %v274
        %v332 = vmul.f32 %v275, %v275
        %v333 = vmul.f32 %v276, %v276
        %v334 = vmul.f32 %v277, %v277
        %v335 = vmul.f32 %v278, %v278
        %v336 = vmul.f32 %v279, %v279
        %v337 = vmul.f32 %v280, %v280
        %v338 = vmul.f32 %v281, %v281
        %v339 = vmul.f32 %v282, %v282
        %v340 = vmul.f32 %v283, %v283
        %v341 = vmul.f32 %v284, %v284
        %v342 = vmul.f32 %v285, %v285
        %v343 = vmul.f32 %v286, %v286
        %v344 = vmul.f32 %v287, %v287
        %v345 = vmul.f32 %v288, %v288
        %v346 = vstv %s289
        %v347 = vmul.f32 %v346, %v290
        %v348 = vmul.f32 %v346, %v291
        %v349 = vmul.f32 %v346, %v292
        %v350 = vmul.f32 %v346, %v293
        %v351 = vmul.f32 %v346, %v294
        %v352 = vmul.f32 %v346, %v295
        %v353 = vmul.f32 %v346, %v296
        %v354 = vmul.f32 %v346, %v297
        %v355 = vmul.f32 %v346, %v298
        %v356 = vmul.f32 %v346, %v299
        %v357 = vmul.f32 %v346, %v300
        %v358 = vmul.f32 %v346, %v301
        %v359 = vmul.f32 %v346, %v302
        %v360 = vmul.f32 %v346, %v303
        %v361 = vmul.f32 %v346, %v304
        %v362 = vmul.f32 %v346, %v305
        %v363 = vmul.f32 %v346, %v306
        %v364 = vmul.f32 %v346, %v307
        %v365 = vmul.f32 %v346, %v308
        %v366 = vmul.f32 %v346, %v309
        %v367 = vmul.f32 %v346, %v310
        %v368 = vmul.f32 %v346, %v311
        %v369 = vmul.f32 %v346, %v312
        %v370 = vmul.f32 %v346, %v313
        %v371 = vmul.f32 %v346, %v314
        %v372 = vmul.f32 %v346, %v315
        %v373 = vmul.f32 %v346, %v316
        %v374 = vmul.f32 %v346, %v317
        %v375 = vmul.f32 %v346, %v318
        %v376 = vmul.f32 %v346, %v319
        %v377 = vmul.f32 %v346, %v320
        %v378 = vmul.f32 %v346, %v321
        %v379 = vmul.f32 %v346, %v322
        %v380 = vmul.f32 %v346, %v323
        %v381 = vmul.f32 %v346, %v324
        %v382 = vmul.f32 %v346, %v325
        %v383 = vmul.f32 %v346, %v326
        %v384 = vmul.f32 %v346, %v327
        %v385 = vmul.f32 %v346, %v328
        %v386 = vmul.f32 %v346, %v329
        %v387 = vmul.f32 %v346, %v330
        %v388 = vmul.f32 %v346, %v331
        %v389 = vmul.f32 %v346, %v332
        %v390 = vmul.f32 %v346, %v333
        %v391 = vmul.f32 %v346, %v334
        %v392 = vmul.f32 %v346, %v335
        %v393 = vmul.f32 %v346, %v336
        %v394 = vmul.f32 %v346, %v337
        %v395 = vmul.f32 %v346, %v338
        %v396 = vmul.f32 %v346, %v339
        %v397 = vmul.f32 %v346, %v340
        %v398 = vmul.f32 %v346, %v341
        %v399 = vmul.f32 %v346, %v342
        %v400 = vmul.f32 %v346, %v343
        %v401 = vmul.f32 %v346, %v344
        %v402 = vmul.f32 %v346, %v345
        %s403 = sld [smem:[#allocation2 + $0x1]]
        %v404 = vstv %s403
        %v405 = vadd.f32 %v347, %v404
        %v406 = vadd.f32 %v348, %v404
        %v407 = vadd.f32 %v349, %v404
        %v408 = vadd.f32 %v350, %v404
        %v409 = vadd.f32 %v351, %v404
        %v410 = vadd.f32 %v352, %v404
        %v411 = vadd.f32 %v353, %v404
        %v412 = vadd.f32 %v354, %v404
        %v413 = vadd.f32 %v355, %v404
        %v414 = vadd.f32 %v356, %v404
        %v415 = vadd.f32 %v357, %v404
        %v416 = vadd.f32 %v358, %v404
        %v417 = vadd.f32 %v359, %v404
        %v418 = vadd.f32 %v360, %v404
        %v419 = vadd.f32 %v361, %v404
        %v420 = vadd.f32 %v362, %v404
        %v421 = vadd.f32 %v363, %v404
        %v422 = vadd.f32 %v364, %v404
        %v423 = vadd.f32 %v365, %v404
        %v424 = vadd.f32 %v366, %v404
        %v425 = vadd.f32 %v367, %v404
        %v426 = vadd.f32 %v368, %v404
        %v427 = vadd.f32 %v369, %v404
        %v428 = vadd.f32 %v370, %v404
        %v429 = vadd.f32 %v371, %v404
        %v430 = vadd.f32 %v372, %v404
        %v431 = vadd.f32 %v373, %v404
        %v432 = vadd.f32 %v374, %v404
        %v433 = vadd.f32 %v375, %v404
        %v434 = vadd.f32 %v376, %v404
        %v435 = vadd.f32 %v377, %v404
        %v436 = vadd.f32 %v378, %v404
        %v437 = vadd.f32 %v379, %v404
        %v438 = vadd.f32 %v380, %v404
        %v439 = vadd.f32 %v381, %v404
        %v440 = vadd.f32 %v382, %v404
        %v441 = vadd.f32 %v383, %v404
        %v442 = vadd.f32 %v384, %v404
        %v443 = vadd.f32 %v385, %v404
        %v444 = vadd.f32 %v386, %v404
        %v445 = vadd.f32 %v387, %v404
        %v446 = vadd.f32 %v388, %v404
        %v447 = vadd.f32 %v389, %v404
        %v448 = vadd.f32 %v390, %v404
        %v449 = vadd.f32 %v391, %v404
        %v450 = vadd.f32 %v392, %v404
        %v451 = vadd.f32 %v393, %v404
        %v452 = vadd.f32 %v394, %v404
        %v453 = vadd.f32 %v395, %v404
        %v454 = vadd.f32 %v396, %v404
        %v455 = vadd.f32 %v397, %v404
        %v456 = vadd.f32 %v398, %v404
        %v457 = vadd.f32 %v399, %v404
        %v458 = vadd.f32 %v400, %v404
        %v459 = vadd.f32 %v401, %v404
        %v460 = vadd.f32 %v402, %v404
        %461 = vst [vmem:[%s174] sm:$0xff] %v405
        %462 = vst [vmem:[%s174 + $0x8] sm:$0xff] %v406
        %463 = vst [vmem:[%s174 + $0x10] sm:$0xff] %v407
        %464 = vst [vmem:[%s174 + $0x18] sm:$0xff] %v408
        %465 = vst [vmem:[%s174 + $0x20] sm:$0xff] %v409
        %466 = vst [vmem:[%s174 + $0x28] sm:$0xff] %v410
        %467 = vst [vmem:[%s174 + $0x30] sm:$0xff] %v411
        %468 = vst [vmem:[%s174 + $0x38] sm:$0xff] %v412
        %469 = vst [vmem:[%s174 + $0x40] sm:$0xff] %v413
        %470 = vst [vmem:[%s174 + $0x48] sm:$0xff] %v414
        %471 = vst [vmem:[%s174 + $0x50] sm:$0xff] %v415
        %472 = vst [vmem:[%s174 + $0x58] sm:$0xff] %v416
        %473 = vst [vmem:[%s174 + $0x60] sm:$0xff] %v417
        %474 = vst [vmem:[%s174 + $0x68] sm:$0xff] %v418
        %475 = vst [vmem:[%s174 + $0x70] sm:$0xff] %v419
        %476 = vst [vmem:[%s174 + $0x78] sm:$0xff] %v420
        %477 = vst [vmem:[%s174 + $0x80] sm:$0xff] %v421
        %478 = vst [vmem:[%s174 + $0x88] sm:$0xff] %v422
        %479 = vst [vmem:[%s174 + $0x90] sm:$0xff] %v423
        %480 = vst [vmem:[%s174 + $0x98] sm:$0xff] %v424
        %481 = vst [vmem:[%s174 + $0xa0] sm:$0xff] %v425
        %482 = vst [vmem:[%s174 + $0xa8] sm:$0xff] %v426
        %483 = vst [vmem:[%s174 + $0xb0] sm:$0xff] %v427
        %484 = vst [vmem:[%s174 + $0xb8] sm:$0xff] %v428
        %485 = vst [vmem:[%s174 + $0xc0] sm:$0xff] %v429
        %486 = vst [vmem:[%s174 + $0xc8] sm:$0xff] %v430
        %487 = vst [vmem:[%s174 + $0xd0] sm:$0xff] %v431
        %488 = vst [vmem:[%s174 + $0xd8] sm:$0xff] %v432
        %489 = vst [vmem:[%s174 + $0xe0] sm:$0xff] %v433
        %490 = vst [vmem:[%s174 + $0xe8] sm:$0xff] %v434
        %491 = vst [vmem:[%s174 + $0xf0] sm:$0xff] %v435
        %492 = vst [vmem:[%s174 + $0xf8] sm:$0xff] %v436
        %493 = vst [vmem:[%s174 + $0x100] sm:$0xff] %v437
        %494 = vst [vmem:[%s174 + $0x108] sm:$0xff] %v438
        %495 = vst [vmem:[%s174 + $0x110] sm:$0xff] %v439
        %496 = vst [vmem:[%s174 + $0x118] sm:$0xff] %v440
        %497 = vst [vmem:[%s174 + $0x120] sm:$0xff] %v441
        %498 = vst [vmem:[%s174 + $0x128] sm:$0xff] %v442
        %499 = vst [vmem:[%s174 + $0x130] sm:$0xff] %v443
        %500 = vst [vmem:[%s174 + $0x138] sm:$0xff] %v444
        %501 = vst [vmem:[%s174 + $0x140] sm:$0xff] %v445
        %502 = vst [vmem:[%s174 + $0x148] sm:$0xff] %v446
        %503 = vst [vmem:[%s174 + $0x150] sm:$0xff] %v447
        %504 = vst [vmem:[%s174 + $0x158] sm:$0xff] %v448
        %505 = vst [vmem:[%s174 + $0x160] sm:$0xff] %v449
        %506 = vst [vmem:[%s174 + $0x168] sm:$0xff] %v450
        %507 = vst [vmem:[%s174 + $0x170] sm:$0xff] %v451
        %508 = vst [vmem:[%s174 + $0x178] sm:$0xff] %v452
        %509 = vst [vmem:[%s174 + $0x180] sm:$0xff] %v453
        %510 = vst [vmem:[%s174 + $0x188] sm:$0xff] %v454
        %511 = vst [vmem:[%s174 + $0x190] sm:$0xff] %v455
        %512 = vst [vmem:[%s174 + $0x198] sm:$0xff] %v456
        %513 = vst [vmem:[%s174 + $0x1a0] sm:$0xff] %v457
        %514 = vst [vmem:[%s174 + $0x1a8] sm:$0xff] %v458
        %515 = vst [vmem:[%s174 + $0x1b0] sm:$0xff] %v459
        %516 = vst [vmem:[%s174 + $0x1b8] sm:$0xff] %v460
        %s517 = sand.u32 %s75, 1
        %s518 = scalar_lea.sflag [#allocation4], %s517
        %s519 = sand.u32 %s75, 1
        %s520 = smul.addr %s519, 448
        %s521 = scalar_lea.vmem [#allocation7], %s520
        // Predicated region
        $region37: #{tpu_custom_call.1} parent=27 // pred_check
          %p522 = pneg %p85
        $region38: #{tpu_custom_call.1} parent=27 // pred_check_branch
          %524 = sbr.rel (%p522) target = $region40
        $region39: #{tpu_custom_call.1} parent=27 // pred_region
          %s525 = smul.u32 7, %s20
          %s527 = ssub.s32 7168, 7168
          %528 = vsyncadd %s518, %s527
          %s529 = smul.addr %s525, 8
          %s530 = smul.addr %s529, 128
          %s531 = scalar_lea.hbm %s2, %s530
          %s532 = sshll.u32 %s521, 4
          %s533 = int_to_ptr.vmem [resolvable:$true] %s532
          %538 = dma.vmem_to_hbm [thread:$0]  %s533, 7168, %s531, %s518, 1024, 1024, 64
        $region40: #{tpu_custom_call.1} parent=27 // pred_fallthru
          _
      $region28: #{tpu_custom_call.1} parent=5 // pred_fallthru
        _
      %p539 = scmp.le.s32.totalorder 2, %s15
      // Predicated region
      $region41: #{tpu_custom_call.1} parent=5 // pred_check
        %p540 = pneg %p539
      $region42: #{tpu_custom_call.1} parent=5 // pred_check_branch
        %542 = sbr.rel (%p540) target = $region44
      $region43: #{tpu_custom_call.1} parent=5 // pred_region
        %s543 = ssub.s32 %s15, 2
        // Predicated region
        $region45: #{tpu_custom_call.1} parent=43 // pred_check
          %p544 = pneg %p91
        $region46: #{tpu_custom_call.1} parent=43 // pred_check_branch
          %546 = sbr.rel (%p544) target = $region48
        $region47: #{tpu_custom_call.1} parent=43 // pred_region
          %s547 = sand.u32 %s76, 1
          %s548 = scalar_lea.sflag [#allocation4], %s547
          %s549 = sand.u32 %s76, 1
          %s550 = smul.addr %s549, 448
          %s551 = scalar_lea.vmem [#allocation7], %s550
          %552 = dma.done %s548, 7168
        $region48: #{tpu_custom_call.1} parent=43 // pred_fallthru
          _
      $region44: #{tpu_custom_call.1} parent=5 // pred_fallthru
        _
    $region6: #{tpu_custom_call.1} parent=1 // loop_footer
      %s19 = sadd.s32 1, %s15
    $region7: #{tpu_custom_call.1} parent=1 // loop_footer_branch
      %14 = sbr.rel target = $region3
    $region8: #{tpu_custom_call.1} parent=1 // loop_exit
      _
    %553 = vsyncpa [#allocation3], 1
    %s554 = scalar_lea.sflag [#allocation3], 1
    %555 = vsyncpa %s554, 1
    %556 = vsyncpa [#allocation4], 1
    %s557 = scalar_lea.sflag [#allocation4], 1
    %558 = vsyncpa %s557, 1
    %559 = vsyncpa [#allocation5], 1
    %s560 = scalar_lea.sflag [#allocation5], 1
    %561 = vsyncpa %s560, 1

</llo_original>
